<compile_context>
chip_gen: v6e
topology: v6e:2x2x1
jax: 0.10.0
libtpu: 0.0.40
codegen_flags: <defaults>
</compile_context>

<pallas_src>
import functools

import jax
import jax.numpy as jnp
from jax.experimental import pallas as pl
from jax.experimental.pallas import tpu as pltpu

_LANE = 128
_SUBLANE = 8


def _round_up(n, m):
    return ((n + m - 1) // m) * m


def _fused_mlp_kernel(num_layers, x_ref, *refs):
    """refs = (w0, b0, w1, b1, ..., w_{L-1}, b_{L-1}, out_ref).

    One batch tile per grid step. Weights/biases are the same block every step
    (constant index_map) so they stay resident in VMEM. Matmuls run on the MXU
    in the params' native dtype with f32 accumulation; tanh runs on the EUP.
    """
    out_ref = refs[-1]
    h = x_ref[...]                               # native-dtype MXU operand
    for layer in range(num_layers):
        w = refs[2 * layer][...]                 # (in_p, out_p) resident in VMEM
        b = refs[2 * layer + 1][...]             # (1, out_p)
        acc = jnp.dot(h, w, preferred_element_type=jnp.float32)
        acc = acc + b.astype(jnp.float32)
        if layer < num_layers - 1:
            h = jnp.tanh(acc).astype(w.dtype)    # back to MXU dtype for next layer
        else:
            h = acc
    out_ref[...] = h.astype(out_ref.dtype)


def mlp_forward(x, weights, biases, *, block_batch=512):
    """x: (B, input_dim); weights[i]: (in_i, out_i); biases[i]: (1, out_i).

    Returns (B, out_dim) in the parameters' dtype. Handles arbitrary B and
    arbitrary (non-128-aligned) feature dims via wrapper-side zero padding.
    """
    num_layers = len(weights)
    assert len(biases) == num_layers
    compute_dtype = jnp.dtype(weights[0].dtype)
    B, in_dim = x.shape
    out_dim = weights[-1].shape[1]

    # ---- lane-dense padding of every feature dim (zero pad is mathematically inert)
    in_p = _round_up(in_dim, _LANE)
    padded_w, padded_b = [], []
    prev = in_p
    for w, b in zip(weights, biases):
        d_in, d_out = w.shape
        d_out_p = _round_up(d_out, _LANE)
        w_p = jnp.pad(w.astype(compute_dtype),
                      ((0, prev - d_in), (0, d_out_p - d_out)))
        b_p = jnp.pad(b.astype(compute_dtype).reshape(1, d_out),
                      ((0, 0), (0, d_out_p - d_out)))
        padded_w.append(w_p)
        padded_b.append(b_p)
        prev = d_out_p
    out_p = prev

    # ---- batch tiling (ragged batch handled by zero padding + final slice)
    tb = min(block_batch, _round_up(B, _SUBLANE))
    B_p = _round_up(B, tb)
    x_p = jnp.pad(x.astype(compute_dtype), ((0, B_p - B), (0, in_p - in_dim)))

    flat_params, param_specs = [], []
    for w_p, b_p in zip(padded_w, padded_b):
        flat_params += [w_p, b_p]
        param_specs += [
            pl.BlockSpec(w_p.shape, lambda i: (0, 0)),   # resident across grid steps
            pl.BlockSpec(b_p.shape, lambda i: (0, 0)),
        ]

    itemsize = compute_dtype.itemsize
    param_bytes = sum(int(p.size) * p.dtype.itemsize for p in flat_params)
    tile_bytes = 2 * tb * (in_p + out_p) * itemsize          # double-buffered x/out
    act_bytes = 4 * tb * max(w.shape[1] for w in padded_w)   # f32 activations
    vmem_limit = int(min(100 * 1024 * 1024,
                         max(32 * 1024 * 1024,
                             2 * (param_bytes + tile_bytes + act_bytes))))

    flops = 2 * B_p * sum(w.shape[0] * w.shape[1] for w in padded_w)
    transcendentals = B_p * sum(w.shape[1] for w in padded_w[:-1])
    bytes_accessed = (int(x_p.size) * itemsize + param_bytes + B_p * out_p * itemsize)

    kernel = functools.partial(_fused_mlp_kernel, num_layers)
    out = pl.pallas_call(
        kernel,
        out_shape=jax.ShapeDtypeStruct((B_p, out_p), compute_dtype),
        grid_spec=pltpu.PrefetchScalarGridSpec(
            num_scalar_prefetch=0,
            grid=(B_p // tb,),
            in_specs=[pl.BlockSpec((tb, in_p), lambda i: (i, 0))] + param_specs,
            out_specs=pl.BlockSpec((tb, out_p), lambda i: (i, 0)),
        ),
        compiler_params=pltpu.CompilerParams(
            dimension_semantics=("parallel",),   # megacore sharding on v7x
            vmem_limit_bytes=vmem_limit,
        ),
        cost_estimate=pl.CostEstimate(
            flops=int(flops),
            transcendentals=int(transcendentals),
            bytes_accessed=int(bytes_accessed),
        ),
    )(x_p, *flat_params)

    return out[:B, :out_dim]


def init_mlp_params(key, num_layers, input_dim, hidden_dim, output_dim,
                    dtype=jnp.float32):
    """Deterministic init matching MLPActor/MLPCritic layer shapes.

    Weights are (in_dim, out_dim) (transposed vs. PyTorch nn.Linear).
    """
    if num_layers < 1:
        raise ValueError("number of layers should be positive!")
    if num_layers == 1:
        dims = [(input_dim, output_dim)]
    else:
        dims = [(input_dim, hidden_dim)]
        dims += [(hidden_dim, hidden_dim)] * (num_layers - 2)
        dims += [(hidden_dim, output_dim)]

    weights, biases = [], []
    for d_in, d_out in dims:
        key, kw, kb = jax.random.split(key, 3)
        bound = 1.0 / float(jnp.sqrt(jnp.float32(d_in)))  # nn.Linear default scale
        weights.append(jax.random.uniform(kw, (d_in, d_out), dtype, -bound, bound))
        biases.append(jax.random.uniform(kb, (1, d_out), dtype, -bound, bound))
    return weights, biases


def mlp_reference(x, weights, biases):
    """Plain-JAX f32 reference mirroring MLPActor/MLPCritic.forward."""
    h = x.astype(jnp.float32)
    n = len(weights)
    for i in range(n):
        h = h @ weights[i].astype(jnp.float32) + biases[i].astype(jnp.float32)
        if i < n - 1:
            h = jnp.tanh(h)
    return h


if __name__ == "__main__":
    key = jax.random.PRNGKey(0)

    # Shapes consistent with ActorCritic: GNN hidden_dim=32, n_graphs=4 jobs
    # n_j=6 candidates each; actor eats concat(candidate_feat, pooled) = 64 dims,
    # critic eats pooled graph embedding = 32 dims; both heads output 1 score.
    n_graphs, n_j, hidden_dim = 4, 6, 32
    num_mlp_layers_actor, hidden_dim_actor = 3, 32
    num_mlp_layers_critic, hidden_dim_critic = 3, 32

    key, k_ax, k_cx, k_ap, k_cp = jax.random.split(key, 5)
    actor_x = jax.random.normal(k_ax, (n_graphs * n_j, hidden_dim * 2), jnp.float32)
    critic_x = jax.random.normal(k_cx, (n_graphs, hidden_dim), jnp.float32)

    actor_w, actor_b = init_mlp_params(
        k_ap, num_mlp_layers_actor, hidden_dim * 2, hidden_dim_actor, 1)
    critic_w, critic_b = init_mlp_params(
        k_cp, num_mlp_layers_critic, hidden_dim, hidden_dim_critic, 1)

    # --- actor head (f32) ---
    actor_scores = jax.block_until_ready(mlp_forward(actor_x, actor_w, actor_b))
    actor_ref = mlp_reference(actor_x, actor_w, actor_b)
    assert actor_scores.shape == (n_graphs * n_j, 1)
    assert jnp.allclose(actor_scores, actor_ref, atol=1e-5, rtol=1e-5)

    # --- critic head (f32) ---
    values = jax.block_until_ready(mlp_forward(critic_x, critic_w, critic_b))
    values_ref = mlp_reference(critic_x, critic_w, critic_b)
    assert values.shape == (n_graphs, 1)
    assert jnp.allclose(values, values_ref, atol=1e-5, rtol=1e-5)

    # --- num_layers == 1 (pure linear) branch ---
    w1, b1 = init_mlp_params(jax.random.PRNGKey(1), 1, hidden_dim * 2, 0, 1)
    lin = jax.block_until_ready(mlp_forward(actor_x, w1, b1))
    lin_ref = mlp_reference(actor_x, w1, b1)
    assert jnp.allclose(lin, lin_ref, atol=1e-5, rtol=1e-5)

    # --- bf16 operands, f32 accumulation (native MXU mode) ---
    actor_w16 = [w.astype(jnp.bfloat16) for w in actor_w]
    actor_b16 = [b.astype(jnp.bfloat16) for b in actor_b]
    scores16 = jax.block_until_ready(
        mlp_forward(actor_x.astype(jnp.bfloat16), actor_w16, actor_b16))
    ref16 = mlp_reference(actor_x.astype(jnp.bfloat16), actor_w16, actor_b16)
    assert jnp.allclose(scores16.astype(jnp.float32), ref16, atol=5e-2, rtol=5e-2)

    print("KERNEL_OK")
</pallas_src>

<mosaic_0001>
module attributes {stable_mosaic.version = 11 : i64} {
  func.func @_fused_mlp_kernel(%arg0: i32, %arg1: memref<24x128xf32, #tpu.memory_space<vmem>>, %arg2: memref<128x128xf32, #tpu.memory_space<vmem>>, %arg3: memref<1x128xf32, #tpu.memory_space<vmem>>, %arg4: memref<128x128xf32, #tpu.memory_space<vmem>>, %arg5: memref<1x128xf32, #tpu.memory_space<vmem>>, %arg6: memref<128x128xf32, #tpu.memory_space<vmem>>, %arg7: memref<1x128xf32, #tpu.memory_space<vmem>>, %arg8: memref<24x128xf32, #tpu.memory_space<vmem>>) attributes {dimension_semantics = [#tpu.dimension_semantics<parallel>], iteration_bounds = array<i64: 1>, scalar_prefetch = 0 : i64, scratch_operands = 0 : i64, tpu.core_type = #tpu.core_type<tc>, window_params = [{transform_indices = @transform_0, window_bounds = array<i64: 24, 128>}, {pipeline_mode = #tpu.pipeline_mode<synchronous>, transform_indices = @transform_1, window_bounds = array<i64: 128, 128>}, {pipeline_mode = #tpu.pipeline_mode<synchronous>, transform_indices = @transform_2, window_bounds = array<i64: 1, 128>}, {pipeline_mode = #tpu.pipeline_mode<synchronous>, transform_indices = @transform_3, window_bounds = array<i64: 128, 128>}, {pipeline_mode = #tpu.pipeline_mode<synchronous>, transform_indices = @transform_4, window_bounds = array<i64: 1, 128>}, {pipeline_mode = #tpu.pipeline_mode<synchronous>, transform_indices = @transform_5, window_bounds = array<i64: 128, 128>}, {pipeline_mode = #tpu.pipeline_mode<synchronous>, transform_indices = @transform_6, window_bounds = array<i64: 1, 128>}, {transform_indices = @transform_7, window_bounds = array<i64: 24, 128>}]} {
    %c0 = arith.constant 0 : index
    %c0_0 = arith.constant 0 : index
    %0 = vector.load %arg1[%c0, %c0_0] : memref<24x128xf32, #tpu.memory_space<vmem>>, vector<24x128xf32>
    %c0_1 = arith.constant 0 : index
    %c0_2 = arith.constant 0 : index
    %1 = vector.load %arg2[%c0_1, %c0_2] : memref<128x128xf32, #tpu.memory_space<vmem>>, vector<128x128xf32>
    %c0_3 = arith.constant 0 : index
    %c0_4 = arith.constant 0 : index
    %2 = vector.load %arg3[%c0_3, %c0_4] : memref<1x128xf32, #tpu.memory_space<vmem>>, vector<1x128xf32>
    %cst = arith.constant dense<0.000000e+00> : vector<24x128xf32>
    %3 = tpu.matmul %0, %1, %cst {dimension_numbers = #tpu.dot_dimension_numbers<[1], [0], [0], [1], [0, 0, 1, 1], [], []>} : vector<24x128xf32>, vector<128x128xf32>, vector<24x128xf32> -> vector<24x128xf32>
    %4 = vector.broadcast %2 : vector<1x128xf32> to vector<24x128xf32>
    %5 = arith.addf %3, %4 : vector<24x128xf32>
    %6 = math.tanh %5 : vector<24x128xf32>
    %c0_5 = arith.constant 0 : index
    %c0_6 = arith.constant 0 : index
    %7 = vector.load %arg4[%c0_5, %c0_6] : memref<128x128xf32, #tpu.memory_space<vmem>>, vector<128x128xf32>
    %c0_7 = arith.constant 0 : index
    %c0_8 = arith.constant 0 : index
    %8 = vector.load %arg5[%c0_7, %c0_8] : memref<1x128xf32, #tpu.memory_space<vmem>>, vector<1x128xf32>
    %cst_9 = arith.constant dense<0.000000e+00> : vector<24x128xf32>
    %9 = tpu.matmul %6, %7, %cst_9 {dimension_numbers = #tpu.dot_dimension_numbers<[1], [0], [0], [1], [0, 0, 1, 1], [], []>} : vector<24x128xf32>, vector<128x128xf32>, vector<24x128xf32> -> vector<24x128xf32>
    %10 = vector.broadcast %8 : vector<1x128xf32> to vector<24x128xf32>
    %11 = arith.addf %9, %10 : vector<24x128xf32>
    %12 = math.tanh %11 : vector<24x128xf32>
    %c0_10 = arith.constant 0 : index
    %c0_11 = arith.constant 0 : index
    %13 = vector.load %arg6[%c0_10, %c0_11] : memref<128x128xf32, #tpu.memory_space<vmem>>, vector<128x128xf32>
    %c0_12 = arith.constant 0 : index
    %c0_13 = arith.constant 0 : index
    %14 = vector.load %arg7[%c0_12, %c0_13] : memref<1x128xf32, #tpu.memory_space<vmem>>, vector<1x128xf32>
    %cst_14 = arith.constant dense<0.000000e+00> : vector<24x128xf32>
    %15 = tpu.matmul %12, %13, %cst_14 {dimension_numbers = #tpu.dot_dimension_numbers<[1], [0], [0], [1], [0, 0, 1, 1], [], []>} : vector<24x128xf32>, vector<128x128xf32>, vector<24x128xf32> -> vector<24x128xf32>
    %16 = vector.broadcast %14 : vector<1x128xf32> to vector<24x128xf32>
    %17 = arith.addf %15, %16 : vector<24x128xf32>
    %c0_15 = arith.constant 0 : index
    %c0_16 = arith.constant 0 : index
    %18 = vector.load %arg8[%c0_15, %c0_16] : memref<24x128xf32, #tpu.memory_space<vmem>>, vector<24x128xf32>
    tpu.vector_store %arg8[%c0_15, %c0_16], %17 {strides = array<i32>} : memref<24x128xf32, #tpu.memory_space<vmem>>, vector<24x128xf32>,
    return
  }
  func.func @transform_0(%arg0: i32) -> (i32, i32) {
    %c0_i32 = arith.constant 0 : i32
    %c0_i32_0 = arith.constant 0 : i32
    return %arg0, %c0_i32 : i32, i32
  }
  func.func @transform_1(%arg0: i32) -> (i32, i32) {
    %c0_i32 = arith.constant 0 : i32
    %c0_i32_0 = arith.constant 0 : i32
    %c0_i32_1 = arith.constant 0 : i32
    return %c0_i32, %c0_i32_0 : i32, i32
  }
  func.func @transform_2(%arg0: i32) -> (i32, i32) {
    %c0_i32 = arith.constant 0 : i32
    %c0_i32_0 = arith.constant 0 : i32
    %c0_i32_1 = arith.constant 0 : i32
    return %c0_i32, %c0_i32_0 : i32, i32
  }
  func.func @transform_3(%arg0: i32) -> (i32, i32) {
    %c0_i32 = arith.constant 0 : i32
    %c0_i32_0 = arith.constant 0 : i32
    %c0_i32_1 = arith.constant 0 : i32
    return %c0_i32, %c0_i32_0 : i32, i32
  }
  func.func @transform_4(%arg0: i32) -> (i32, i32) {
    %c0_i32 = arith.constant 0 : i32
    %c0_i32_0 = arith.constant 0 : i32
    %c0_i32_1 = arith.constant 0 : i32
    return %c0_i32, %c0_i32_0 : i32, i32
  }
  func.func @transform_5(%arg0: i32) -> (i32, i32) {
    %c0_i32 = arith.constant 0 : i32
    %c0_i32_0 = arith.constant 0 : i32
    %c0_i32_1 = arith.constant 0 : i32
    return %c0_i32, %c0_i32_0 : i32, i32
  }
  func.func @transform_6(%arg0: i32) -> (i32, i32) {
    %c0_i32 = arith.constant 0 : i32
    %c0_i32_0 = arith.constant 0 : i32
    %c0_i32_1 = arith.constant 0 : i32
    return %c0_i32, %c0_i32_0 : i32, i32
  }
  func.func @transform_7(%arg0: i32) -> (i32, i32) {
    %c0_i32 = arith.constant 0 : i32
    %c0_i32_0 = arith.constant 0 : i32
    return %arg0, %c0_i32 : i32, i32
  }
}

</mosaic_0001>

<llo_original>
// kernel: tpu_custom_call.1
$region0: #{tpu_custom_call.1}
  #allocation0 [shape = 'u32[]', space=smem, size = 0x4, offset = 0x4, fixed_abs, tag = 'smem constant byte address 0x4 - core index']
  #allocation1 [shape = 'u32[144,128]{1,0:T(1,128)}', space=vmem, size = 0x12000, scoped, tag = 'internal scratch']
  %s0 = inlined_call_operand.hbm [shape: f32[24,128], index: 0, kind: input, shape index: {}]
  %s1 = inlined_call_operand.hbm [shape: f32[128,128], index: 1, kind: input, shape index: {}]
  %s2 = inlined_call_operand.vmem [shape: f32[1,128], index: 2, kind: input, shape index: {}]
  %s3 = inlined_call_operand.hbm [shape: f32[128,128], index: 3, kind: input, shape index: {}]
  %s4 = inlined_call_operand.vmem [shape: f32[1,128], index: 4, kind: input, shape index: {}]
  %s5 = inlined_call_operand.hbm [shape: f32[128,128], index: 5, kind: input, shape index: {}]
  %s6 = inlined_call_operand.vmem [shape: f32[1,128], index: 6, kind: input, shape index: {}]
  %s7 = inlined_call_operand.hbm [shape: f32[24,128], index: 7, kind: output, shape index: {}]
  %s8 = sld [smem:[#allocation0]]
  $region54: #{tpu_custom_call.1} parent=0
    _
  %s10 = ssub.s32 1, %s8
  %s11 = scalar_select 0, %s10, %s8
  $region1: #{tpu_custom_call.1} parent=0
    #allocation2 [shape = 'u8[12288]{0}', space=vmem, size = 0x3000, scoped, tag = 'input window, operand 0, single buffered']
    #allocation3 [shape = 's32[1]{0}', space=sflag, size = 0x4, scoped, tag = 'scoped memory for tpu_custom_call.1']
    #allocation4 [shape = 's32[1]{0}', space=sflag, size = 0x4, scoped, tag = 'scoped memory for tpu_custom_call.1']
    #allocation5 [shape = 'u8[65536]{0}', space=vmem, size = 0x10000, scoped, tag = 'input window, operand 1, single buffered']
    #allocation6 [shape = 's32[1]{0}', space=sflag, size = 0x4, scoped, tag = 'scoped memory for tpu_custom_call.1']
    #allocation7 [shape = 'u8[65536]{0}', space=vmem, size = 0x10000, scoped, tag = 'input window, operand 3, single buffered']
    #allocation8 [shape = 'u8[65536]{0}', space=vmem, size = 0x10000, scoped, tag = 'input window, operand 5, single buffered']
    #allocation9 [shape = 's32[1]{0}', space=sflag, size = 0x4, scoped, tag = 'scoped memory for tpu_custom_call.1']
    #allocation10 [shape = 'u8[12288]{0}', space=vmem, size = 0x3000, scoped, tag = 'output window, operand 0, single buffered']
    %12 = vsyncpa [#allocation3], 0
    %13 = vsyncpa [#allocation6], 0
    %14 = vsyncpa [#allocation9], 0
    %15 = vsyncpa [#allocation4], 0
    // Predicated region
    $region2: #{tpu_custom_call.1} parent=1 // pred_check
      _
    $region3: #{tpu_custom_call.1} parent=1 // pred_check_branch
      %17 = sbr.rel (0) target = $region5
    $region4: #{tpu_custom_call.1} parent=1 // pred_region
      %s19 = ssub.s32 384, 384
      %20 = vsyncadd [#allocation3], %s19
      %s21 = sshll.u32 [#allocation2], 4
      %s22 = int_to_ptr.vmem [resolvable:$true] %s21
      %27 = dma.hbm_to_vmem [thread:$0]  %s0, 384, %s22, [#allocation3], 128, 128, 8
    $region5: #{tpu_custom_call.1} parent=1 // pred_fallthru
      _
    // Predicated region
    $region6: #{tpu_custom_call.1} parent=1 // pred_check
      _
    $region7: #{tpu_custom_call.1} parent=1 // pred_check_branch
      %29 = sbr.rel (0) target = $region9
    $region8: #{tpu_custom_call.1} parent=1 // pred_region
      %s31 = ssub.s32 2048, 2048
      %32 = vsyncadd [#allocation6], %s31
      %s33 = sshll.u32 [#allocation5], 4
      %s34 = int_to_ptr.vmem [resolvable:$true] %s33
      %39 = dma.hbm_to_vmem [thread:$0]  %s1, 2048, %s34, [#allocation6], 128, 128, 8
    $region9: #{tpu_custom_call.1} parent=1 // pred_fallthru
      _
    // Predicated region
    $region10: #{tpu_custom_call.1} parent=1 // pred_check
      _
    $region11: #{tpu_custom_call.1} parent=1 // pred_check_branch
      %41 = sbr.rel (0) target = $region13
    $region12: #{tpu_custom_call.1} parent=1 // pred_region
      _
    $region13: #{tpu_custom_call.1} parent=1 // pred_fallthru
      _
    // Predicated region
    $region14: #{tpu_custom_call.1} parent=1 // pred_check
      _
    $region15: #{tpu_custom_call.1} parent=1 // pred_check_branch
      %43 = sbr.rel (0) target = $region17
    $region16: #{tpu_custom_call.1} parent=1 // pred_region
      %s45 = ssub.s32 2048, 2048
      %46 = vsyncadd [#allocation6], %s45
      %s47 = sshll.u32 [#allocation7], 4
      %s48 = int_to_ptr.vmem [resolvable:$true] %s47
      %53 = dma.hbm_to_vmem [thread:$0]  %s3, 2048, %s48, [#allocation6], 128, 128, 8
    $region17: #{tpu_custom_call.1} parent=1 // pred_fallthru
      _
    // Predicated region
    $region18: #{tpu_custom_call.1} parent=1 // pred_check
      _
    $region19: #{tpu_custom_call.1} parent=1 // pred_check_branch
      %55 = sbr.rel (0) target = $region21
    $region20: #{tpu_custom_call.1} parent=1 // pred_region
      _
    $region21: #{tpu_custom_call.1} parent=1 // pred_fallthru
      _
    // Predicated region
    $region22: #{tpu_custom_call.1} parent=1 // pred_check
      _
    $region23: #{tpu_custom_call.1} parent=1 // pred_check_branch
      %57 = sbr.rel (0) target = $region25
    $region24: #{tpu_custom_call.1} parent=1 // pred_region
      %s59 = ssub.s32 2048, 2048
      %60 = vsyncadd [#allocation9], %s59
      %s61 = sshll.u32 [#allocation8], 4
      %s62 = int_to_ptr.vmem [resolvable:$true] %s61
      %67 = dma.hbm_to_vmem [thread:$0]  %s5, 2048, %s62, [#allocation9], 128, 128, 8
    $region25: #{tpu_custom_call.1} parent=1 // pred_fallthru
      _
    // Predicated region
    $region26: #{tpu_custom_call.1} parent=1 // pred_check
      _
    $region27: #{tpu_custom_call.1} parent=1 // pred_check_branch
      %69 = sbr.rel (0) target = $region29
    $region28: #{tpu_custom_call.1} parent=1 // pred_region
      _
    $region29: #{tpu_custom_call.1} parent=1 // pred_fallthru
      _
    // Predicated region
    $region30: #{tpu_custom_call.1} parent=1 // pred_check
      _
    $region31: #{tpu_custom_call.1} parent=1 // pred_check_branch
      %71 = sbr.rel (0) target = $region33
    $region32: #{tpu_custom_call.1} parent=1 // pred_region
      %72 = dma.done [#allocation3], 384
    $region33: #{tpu_custom_call.1} parent=1 // pred_fallthru
      _
    // Predicated region
    $region34: #{tpu_custom_call.1} parent=1 // pred_check
      _
    $region35: #{tpu_custom_call.1} parent=1 // pred_check_branch
      %74 = sbr.rel (0) target = $region37
    $region36: #{tpu_custom_call.1} parent=1 // pred_region
      %75 = dma.done [#allocation6], 2048
    $region37: #{tpu_custom_call.1} parent=1 // pred_fallthru
      _
    // Predicated region
    $region38: #{tpu_custom_call.1} parent=1 // pred_check
      _
    $region39: #{tpu_custom_call.1} parent=1 // pred_check_branch
      %77 = sbr.rel (0) target = $region41
    $region40: #{tpu_custom_call.1} parent=1 // pred_region
      %78 = dma.done [#allocation6], 2048
    $region41: #{tpu_custom_call.1} parent=1 // pred_fallthru
      _
    // Predicated region
    $region42: #{tpu_custom_call.1} parent=1 // pred_check
      _
    $region43: #{tpu_custom_call.1} parent=1 // pred_check_branch
      %80 = sbr.rel (0) target = $region45
    $region44: #{tpu_custom_call.1} parent=1 // pred_region
      %81 = dma.done [#allocation9], 2048
    $region45: #{tpu_custom_call.1} parent=1 // pred_fallthru
      _
    %v82 = vld [vmem:[#allocation2] sm:$0xff]
    %v83 = vld [vmem:[#allocation2 + $0x8] sm:$0xff]
    %v84 = vld [vmem:[#allocation2 + $0x10] sm:$0xff]
    %v85 = vld [vmem:[#allocation5] sm:$0xff]
    %v86 = vld [vmem:[#allocation5 + $0x8] sm:$0xff]
    %v87 = vld [vmem:[#allocation5 + $0x10] sm:$0xff]
    %v88 = vld [vmem:[#allocation5 + $0x18] sm:$0xff]
    %v89 = vld [vmem:[#allocation5 + $0x20] sm:$0xff]
    %v90 = vld [vmem:[#allocation5 + $0x28] sm:$0xff]
    %v91 = vld [vmem:[#allocation5 + $0x30] sm:$0xff]
    %v92 = vld [vmem:[#allocation5 + $0x38] sm:$0xff]
    %v93 = vld [vmem:[#allocation5 + $0x40] sm:$0xff]
    %v94 = vld [vmem:[#allocation5 + $0x48] sm:$0xff]
    %v95 = vld [vmem:[#allocation5 + $0x50] sm:$0xff]
    %v96 = vld [vmem:[#allocation5 + $0x58] sm:$0xff]
    %v97 = vld [vmem:[#allocation5 + $0x60] sm:$0xff]
    %v98 = vld [vmem:[#allocation5 + $0x68] sm:$0xff]
    %v99 = vld [vmem:[#allocation5 + $0x70] sm:$0xff]
    %v100 = vld [vmem:[#allocation5 + $0x78] sm:$0xff]
    %v101 = vld [vmem:[%s2] sm:$0x1]
    %v103 = vlaneseq
    %v104 = vshrl.u32 %v103, 7
    %v105 = vsub.s32 0, %v104
    %v106 = vrot.slane %v101, %v105
    %108 = vmatprep.subr.mxu0 0.0
    %109 = vmatpush1.msra.mxu0 %v100
    %110 = vmatprep.subr.mxu0 0.0
    %111 = vmatpush1.msra.mxu0 %v99
    %112 = vmatprep.subr.mxu0 0.0
    %113 = vmatpush1.msra.mxu0 %v98
    %114 = vmatprep.subr.mxu0 0.0
    %115 = vmatpush1.msra.mxu0 %v97
    %116 = vmatprep.subr.mxu0 0.0
    %117 = vmatpush1.msra.mxu0 %v96
    %118 = vmatprep.subr.mxu0 0.0
    %119 = vmatpush1.msra.mxu0 %v95
    %120 = vmatprep.subr.mxu0 0.0
    %121 = vmatpush1.msra.mxu0 %v94
    %122 = vmatprep.subr.mxu0 0.0
    %123 = vmatpush1.msra.mxu0 %v93
    %124 = vmatprep.subr.mxu0 0.0
    %125 = vmatpush1.msra.mxu0 %v92
    %126 = vmatprep.subr.mxu0 0.0
    %127 = vmatpush1.msra.mxu0 %v91
    %128 = vmatprep.subr.mxu0 0.0
    %129 = vmatpush1.msra.mxu0 %v90
    %130 = vmatprep.subr.mxu0 0.0
    %131 = vmatpush1.msra.mxu0 %v89
    %132 = vmatprep.subr.mxu0 0.0
    %133 = vmatpush1.msra.mxu0 %v88
    %134 = vmatprep.subr.mxu0 0.0
    %135 = vmatpush1.msra.mxu0 %v87
    %136 = vmatprep.subr.mxu0 0.0
    %137 = vmatpush1.msra.mxu0 %v86
    %138 = vmatprep.subr.mxu0 0.0
    %139 = vmatpush1.msra.mxu0 %v85
    %140 = vmatprep.subr.mxu0 0.0
    %141 = vmatpush2.msra.mxu0 0.0
    %142 = vmatprep.subr.mxu0 0.0
    %143 = vmatpush2.msra.mxu0 0.0
    %144 = vmatprep.subr.mxu0 0.0
    %145 = vmatpush2.msra.mxu0 0.0
    %146 = vmatprep.subr.mxu0 0.0
    %147 = vmatpush2.msra.mxu0 0.0
    %148 = vmatprep.subr.mxu0 0.0
    %149 = vmatpush2.msra.mxu0 0.0
    %150 = vmatprep.subr.mxu0 0.0
    %151 = vmatpush2.msra.mxu0 0.0
    %152 = vmatprep.subr.mxu0 0.0
    %153 = vmatpush2.msra.mxu0 0.0
    %154 = vmatprep.subr.mxu0 0.0
    %155 = vmatpush2.msra.mxu0 0.0
    %156 = vmatprep.subr.mxu0 0.0
    %157 = vmatpush2.msra.mxu0 0.0
    %158 = vmatprep.subr.mxu0 0.0
    %159 = vmatpush2.msra.mxu0 0.0
    %160 = vmatprep.subr.mxu0 0.0
    %161 = vmatpush2.msra.mxu0 0.0
    %162 = vmatprep.subr.mxu0 0.0
    %163 = vmatpush2.msra.mxu0 0.0
    %164 = vmatprep.subr.mxu0 0.0
    %165 = vmatpush2.msra.mxu0 0.0
    %166 = vmatprep.subr.mxu0 0.0
    %167 = vmatpush2.msra.mxu0 0.0
    %168 = vmatprep.subr.mxu0 0.0
    %169 = vmatpush2.msra.mxu0 0.0
    %170 = vmatprep.subr.mxu0 0.0
    %171 = vmatpush2.msra.mxu0 0.0
    %172 = vmatprep.mubr.f32.mxu0 0.0
    %173 = vmatmul.mubr.f32.gmra.mxu0 %v82
    %v174 = vpop.f32.mrf.mxu0
    %v175 = vadd.f32 %v106, %v174
    %v176 = vpop.f32.mrf.mxu0
    %177 = vmatprep.mubr.f32.mxu0 0.0
    %178 = vmatmul.mubr.f32.gmra.mxu0 %v83
    %v179 = vpop.f32.mrf.mxu0
    %v180 = vadd.f32 %v106, %v179
    %v181 = vpop.f32.mrf.mxu0
    %182 = vmatprep.mubr.f32.mxu0 0.0
    %183 = vmatmul.mubr.f32.gmra.mxu0 %v84
    %v184 = vpop.f32.mrf.mxu0
    %v185 = vadd.f32 %v106, %v184
    %v186 = vpop.f32.mrf.mxu0
    %187 = vdwg.mxu0
    %v188 = vtanh.pop %v175
    %v189 = vtanh.pop %v180
    %v190 = vtanh.pop %v185
    %v191 = vld [vmem:[#allocation7] sm:$0xff]
    %v192 = vld [vmem:[#allocation7 + $0x8] sm:$0xff]
    %v193 = vld [vmem:[#allocation7 + $0x10] sm:$0xff]
    %v194 = vld [vmem:[#allocation7 + $0x18] sm:$0xff]
    %v195 = vld [vmem:[#allocation7 + $0x20] sm:$0xff]
    %v196 = vld [vmem:[#allocation7 + $0x28] sm:$0xff]
    %v197 = vld [vmem:[#allocation7 + $0x30] sm:$0xff]
    %v198 = vld [vmem:[#allocation7 + $0x38] sm:$0xff]
    %v199 = vld [vmem:[#allocation7 + $0x40] sm:$0xff]
    %v200 = vld [vmem:[#allocation7 + $0x48] sm:$0xff]
    %v201 = vld [vmem:[#allocation7 + $0x50] sm:$0xff]
    %v202 = vld [vmem:[#allocation7 + $0x58] sm:$0xff]
    %v203 = vld [vmem:[#allocation7 + $0x60] sm:$0xff]
    %v204 = vld [vmem:[#allocation7 + $0x68] sm:$0xff]
    %v205 = vld [vmem:[#allocation7 + $0x70] sm:$0xff]
    %v206 = vld [vmem:[#allocation7 + $0x78] sm:$0xff]
    %v207 = vld [vmem:[%s4] sm:$0x1]
    %v209 = vlaneseq
    %v210 = vshrl.u32 %v209, 7
    %v211 = vsub.s32 0, %v210
    %v212 = vrot.slane %v207, %v211
    %214 = vmatprep.subr.mxu0 0.0
    %215 = vmatpush1.msra.mxu0 %v206
    %216 = vmatprep.subr.mxu0 0.0
    %217 = vmatpush1.msra.mxu0 %v205
    %218 = vmatprep.subr.mxu0 0.0
    %219 = vmatpush1.msra.mxu0 %v204
    %220 = vmatprep.subr.mxu0 0.0
    %221 = vmatpush1.msra.mxu0 %v203
    %222 = vmatprep.subr.mxu0 0.0
    %223 = vmatpush1.msra.mxu0 %v202
    %224 = vmatprep.subr.mxu0 0.0
    %225 = vmatpush1.msra.mxu0 %v201
    %226 = vmatprep.subr.mxu0 0.0
    %227 = vmatpush1.msra.mxu0 %v200
    %228 = vmatprep.subr.mxu0 0.0
    %229 = vmatpush1.msra.mxu0 %v199
    %230 = vmatprep.subr.mxu0 0.0
    %231 = vmatpush1.msra.mxu0 %v198
    %232 = vmatprep.subr.mxu0 0.0
    %233 = vmatpush1.msra.mxu0 %v197
    %234 = vmatprep.subr.mxu0 0.0
    %235 = vmatpush1.msra.mxu0 %v196
    %236 = vmatprep.subr.mxu0 0.0
    %237 = vmatpush1.msra.mxu0 %v195
    %238 = vmatprep.subr.mxu0 0.0
    %239 = vmatpush1.msra.mxu0 %v194
    %240 = vmatprep.subr.mxu0 0.0
    %241 = vmatpush1.msra.mxu0 %v193
    %242 = vmatprep.subr.mxu0 0.0
    %243 = vmatpush1.msra.mxu0 %v192
    %244 = vmatprep.subr.mxu0 0.0
    %245 = vmatpush1.msra.mxu0 %v191
    %246 = vmatprep.subr.mxu0 0.0
    %247 = vmatpush2.msra.mxu0 0.0
    %248 = vmatprep.subr.mxu0 0.0
    %249 = vmatpush2.msra.mxu0 0.0
    %250 = vmatprep.subr.mxu0 0.0
    %251 = vmatpush2.msra.mxu0 0.0
    %252 = vmatprep.subr.mxu0 0.0
    %253 = vmatpush2.msra.mxu0 0.0
    %254 = vmatprep.subr.mxu0 0.0
    %255 = vmatpush2.msra.mxu0 0.0
    %256 = vmatprep.subr.mxu0 0.0
    %257 = vmatpush2.msra.mxu0 0.0
    %258 = vmatprep.subr.mxu0 0.0
    %259 = vmatpush2.msra.mxu0 0.0
    %260 = vmatprep.subr.mxu0 0.0
    %261 = vmatpush2.msra.mxu0 0.0
    %262 = vmatprep.subr.mxu0 0.0
    %263 = vmatpush2.msra.mxu0 0.0
    %264 = vmatprep.subr.mxu0 0.0
    %265 = vmatpush2.msra.mxu0 0.0
    %266 = vmatprep.subr.mxu0 0.0
    %267 = vmatpush2.msra.mxu0 0.0
    %268 = vmatprep.subr.mxu0 0.0
    %269 = vmatpush2.msra.mxu0 0.0
    %270 = vmatprep.subr.mxu0 0.0
    %271 = vmatpush2.msra.mxu0 0.0
    %272 = vmatprep.subr.mxu0 0.0
    %273 = vmatpush2.msra.mxu0 0.0
    %274 = vmatprep.subr.mxu0 0.0
    %275 = vmatpush2.msra.mxu0 0.0
    %276 = vmatprep.subr.mxu0 0.0
    %277 = vmatpush2.msra.mxu0 0.0
    %278 = vmatprep.mubr.f32.mxu0 0.0
    %279 = vmatmul.mubr.f32.gmra.mxu0 %v188
    %v280 = vpop.f32.mrf.mxu0
    %v281 = vadd.f32 %v212, %v280
    %v282 = vpop.f32.mrf.mxu0
    %283 = vmatprep.mubr.f32.mxu0 0.0
    %284 = vmatmul.mubr.f32.gmra.mxu0 %v189
    %v285 = vpop.f32.mrf.mxu0
    %v286 = vadd.f32 %v212, %v285
    %v287 = vpop.f32.mrf.mxu0
    %288 = vmatprep.mubr.f32.mxu0 0.0
    %289 = vmatmul.mubr.f32.gmra.mxu0 %v190
    %v290 = vpop.f32.mrf.mxu0
    %v291 = vadd.f32 %v212, %v290
    %v292 = vpop.f32.mrf.mxu0
    %293 = vdwg.mxu0
    %v294 = vtanh.pop %v281
    %v295 = vtanh.pop %v286
    %v296 = vtanh.pop %v291
    %v297 = vld [vmem:[#allocation8] sm:$0xff]
    %v298 = vld [vmem:[#allocation8 + $0x8] sm:$0xff]
    %v299 = vld [vmem:[#allocation8 + $0x10] sm:$0xff]
    %v300 = vld [vmem:[#allocation8 + $0x18] sm:$0xff]
    %v301 = vld [vmem:[#allocation8 + $0x20] sm:$0xff]
    %v302 = vld [vmem:[#allocation8 + $0x28] sm:$0xff]
    %v303 = vld [vmem:[#allocation8 + $0x30] sm:$0xff]
    %v304 = vld [vmem:[#allocation8 + $0x38] sm:$0xff]
    %v305 = vld [vmem:[#allocation8 + $0x40] sm:$0xff]
    %v306 = vld [vmem:[#allocation8 + $0x48] sm:$0xff]
    %v307 = vld [vmem:[#allocation8 + $0x50] sm:$0xff]
    %v308 = vld [vmem:[#allocation8 + $0x58] sm:$0xff]
    %v309 = vld [vmem:[#allocation8 + $0x60] sm:$0xff]
    %v310 = vld [vmem:[#allocation8 + $0x68] sm:$0xff]
    %v311 = vld [vmem:[#allocation8 + $0x70] sm:$0xff]
    %v312 = vld [vmem:[#allocation8 + $0x78] sm:$0xff]
    %v313 = vld [vmem:[%s6] sm:$0x1]
    %v315 = vlaneseq
    %v316 = vshrl.u32 %v315, 7
    %v317 = vsub.s32 0, %v316
    %v318 = vrot.slane %v313, %v317
    %320 = vmatprep.subr.mxu0 0.0
    %321 = vmatpush1.msra.mxu0 %v312
    %322 = vmatprep.subr.mxu0 0.0
    %323 = vmatpush1.msra.mxu0 %v311
    %324 = vmatprep.subr.mxu0 0.0
    %325 = vmatpush1.msra.mxu0 %v310
    %326 = vmatprep.subr.mxu0 0.0
    %327 = vmatpush1.msra.mxu0 %v309
    %328 = vmatprep.subr.mxu0 0.0
    %329 = vmatpush1.msra.mxu0 %v308
    %330 = vmatprep.subr.mxu0 0.0
    %331 = vmatpush1.msra.mxu0 %v307
    %332 = vmatprep.subr.mxu0 0.0
    %333 = vmatpush1.msra.mxu0 %v306
    %334 = vmatprep.subr.mxu0 0.0
    %335 = vmatpush1.msra.mxu0 %v305
    %336 = vmatprep.subr.mxu0 0.0
    %337 = vmatpush1.msra.mxu0 %v304
    %338 = vmatprep.subr.mxu0 0.0
    %339 = vmatpush1.msra.mxu0 %v303
    %340 = vmatprep.subr.mxu0 0.0
    %341 = vmatpush1.msra.mxu0 %v302
    %342 = vmatprep.subr.mxu0 0.0
    %343 = vmatpush1.msra.mxu0 %v301
    %344 = vmatprep.subr.mxu0 0.0
    %345 = vmatpush1.msra.mxu0 %v300
    %346 = vmatprep.subr.mxu0 0.0
    %347 = vmatpush1.msra.mxu0 %v299
    %348 = vmatprep.subr.mxu0 0.0
    %349 = vmatpush1.msra.mxu0 %v298
    %350 = vmatprep.subr.mxu0 0.0
    %351 = vmatpush1.msra.mxu0 %v297
    %352 = vmatprep.subr.mxu0 0.0
    %353 = vmatpush2.msra.mxu0 0.0
    %354 = vmatprep.subr.mxu0 0.0
    %355 = vmatpush2.msra.mxu0 0.0
    %356 = vmatprep.subr.mxu0 0.0
    %357 = vmatpush2.msra.mxu0 0.0
    %358 = vmatprep.subr.mxu0 0.0
    %359 = vmatpush2.msra.mxu0 0.0
    %360 = vmatprep.subr.mxu0 0.0
    %361 = vmatpush2.msra.mxu0 0.0
    %362 = vmatprep.subr.mxu0 0.0
    %363 = vmatpush2.msra.mxu0 0.0
    %364 = vmatprep.subr.mxu0 0.0
    %365 = vmatpush2.msra.mxu0 0.0
    %366 = vmatprep.subr.mxu0 0.0
    %367 = vmatpush2.msra.mxu0 0.0
    %368 = vmatprep.subr.mxu0 0.0
    %369 = vmatpush2.msra.mxu0 0.0
    %370 = vmatprep.subr.mxu0 0.0
    %371 = vmatpush2.msra.mxu0 0.0
    %372 = vmatprep.subr.mxu0 0.0
    %373 = vmatpush2.msra.mxu0 0.0
    %374 = vmatprep.subr.mxu0 0.0
    %375 = vmatpush2.msra.mxu0 0.0
    %376 = vmatprep.subr.mxu0 0.0
    %377 = vmatpush2.msra.mxu0 0.0
    %378 = vmatprep.subr.mxu0 0.0
    %379 = vmatpush2.msra.mxu0 0.0
    %380 = vmatprep.subr.mxu0 0.0
    %381 = vmatpush2.msra.mxu0 0.0
    %382 = vmatprep.subr.mxu0 0.0
    %383 = vmatpush2.msra.mxu0 0.0
    %384 = vmatprep.mubr.f32.mxu0 0.0
    %385 = vmatmul.mubr.f32.gmra.mxu0 %v294
    %v386 = vpop.f32.mrf.mxu0
    %v387 = vadd.f32 %v318, %v386
    %v388 = vpop.f32.mrf.mxu0
    %389 = vmatprep.mubr.f32.mxu0 0.0
    %390 = vmatmul.mubr.f32.gmra.mxu0 %v295
    %v391 = vpop.f32.mrf.mxu0
    %v392 = vadd.f32 %v318, %v391
    %v393 = vpop.f32.mrf.mxu0
    %394 = vmatprep.mubr.f32.mxu0 0.0
    %395 = vmatmul.mubr.f32.gmra.mxu0 %v296
    %v396 = vpop.f32.mrf.mxu0
    %v397 = vadd.f32 %v318, %v396
    %v398 = vpop.f32.mrf.mxu0
    %399 = vdwg.mxu0
    %400 = vst [vmem:[#allocation10] sm:$0xff] %v387
    %401 = vst [vmem:[#allocation10 + $0x8] sm:$0xff] %v392
    %402 = vst [vmem:[#allocation10 + $0x10] sm:$0xff] %v397
    // Predicated region
    $region46: #{tpu_custom_call.1} parent=1 // pred_check
      _
    $region47: #{tpu_custom_call.1} parent=1 // pred_check_branch
      %404 = sbr.rel (0) target = $region49
    $region48: #{tpu_custom_call.1} parent=1 // pred_region
      %s406 = ssub.s32 384, 384
      %407 = vsyncadd [#allocation4], %s406
      %s408 = sshll.u32 [#allocation10], 4
      %s409 = int_to_ptr.vmem [resolvable:$true] %s408
      %414 = dma.vmem_to_hbm [thread:$0]  %s409, 384, %s7, [#allocation4], 128, 128, 8
    $region49: #{tpu_custom_call.1} parent=1 // pred_fallthru
      _
    // Predicated region
    $region50: #{tpu_custom_call.1} parent=1 // pred_check
      _
    $region51: #{tpu_custom_call.1} parent=1 // pred_check_branch
      %416 = sbr.rel (0) target = $region53
    $region52: #{tpu_custom_call.1} parent=1 // pred_region
      %417 = dma.done [#allocation4], 384
    $region53: #{tpu_custom_call.1} parent=1 // pred_fallthru
      _
    %418 = vsyncpa [#allocation3], 1
    %419 = vsyncpa [#allocation6], 1
    %420 = vsyncpa [#allocation9], 1
    %421 = vsyncpa [#allocation4], 1

</llo_original>
